<compile_context>
chip_gen: v7x
topology: tpu7x:2x2x1
jax: 0.10.0
libtpu: 0.0.40
codegen_flags: <defaults>
</compile_context>

<pallas_src>
import functools

import jax
import jax.numpy as jnp
from jax.experimental import pallas as pl
from jax.experimental.pallas import tpu as pltpu

HIDDEN = 500          # logical hidden size (PyTorch fc1 out_features)
HIDDEN_PAD = 512      # padded to 4x128 lanes for clean vreg tiling
VOCAB_LANE = 128      # vocab padded up to a multiple of 128 lanes
NEG_SLOPE = 0.01      # F.leaky_relu default
NEG_INF = -1e30       # bias for padded vocab lanes (exp underflows to 0)

# Total VMEM we plan against (safe on v7x's 64 MiB per-TC physical VMEM and
# well under v5e/v6e's 128 MiB); the actual compiler limit is derived below.
VMEM_TARGET = 44 << 20


def _round_up(x, m):
    return ((x + m - 1) // m) * m


def _use_bf16_vpu():
    """bf16 VALU/EUP exist on v6e/v7x; keep f32 elementwise math elsewhere."""
    try:
        kind = jax.devices()[0].device_kind.lower()
    except Exception:
        return False
    return any(tag in kind for tag in ("v6", "v7", "7x"))


def sender2_kernel(x_ref, w1_ref, b1_ref, w2_ref, b2_ref, out_ref, *, bf16_exp):
    # x_ref:  [TB, 4]   float32   (full input; column 0 is unused)
    # w1_ref: [8, HP]   compute dtype (rows 0..2 = real fc1 weight, rest zero)
    # b1_ref: [1, HP]   compute dtype
    # w2_ref: [HP, VP]  bfloat16  (zero-padded rows/cols)
    # b2_ref: [1, VP]   float32   (padded lanes = NEG_INF)
    # out_ref:[TB, VP]  float32   log-softmax over the last axis
    x = x_ref[...].astype(w1_ref.dtype)

    # fc1 as 3 VPU broadcast FMAs (a K=3 MXU matmul is ~2% utilized and pays
    # the full push/pop latency; the VALU finishes this in a few bundles).
    h = (x[:, 1:2] * w1_ref[0:1, :]
         + x[:, 2:3] * w1_ref[1:2, :]
         + x[:, 3:4] * w1_ref[2:3, :]
         + b1_ref[...])
    # leaky_relu via mul+max (identical to cmp+select for 0 < slope < 1).
    h = jnp.maximum(h, jnp.asarray(NEG_SLOPE, h.dtype) * h)

    # fc2 on the MXU: bf16 operands, f32 accumulate. Keep logits / bias / max
    # in f32 so the -1e30 padded-lane bias stays representable.
    logits = jnp.dot(h.astype(jnp.bfloat16), w2_ref[...],
                     preferred_element_type=jnp.float32) + b2_ref[...]

    # Numerically stable log_softmax along the lane axis. Padded vocab lanes
    # carry -1e30 logits: they never win the max and exp() underflows to 0.
    m = jnp.max(logits, axis=-1, keepdims=True)
    z = logits - m
    if bf16_exp:
        e = jnp.exp(z.astype(jnp.bfloat16)).astype(jnp.float32)
    else:
        e = jnp.exp(z)
    lse = jnp.log(jnp.sum(e, axis=-1, keepdims=True))
    out_ref[...] = (z - lse).astype(out_ref.dtype)


def prepare_params(w1, b1, w2, b2, hidden_pad=HIDDEN_PAD,
                   compute_dtype=jnp.float32):
    """Pad/cast logical params (w1[3,H], b1[H], w2[H,V], b2[V]) to kernel layout."""
    hidden = w1.shape[1]
    vocab = w2.shape[1]
    vocab_pad = _round_up(vocab, VOCAB_LANE)
    w1p = (jnp.zeros((8, hidden_pad), jnp.float32)
           .at[:3, :hidden].set(w1).astype(compute_dtype))
    b1p = (jnp.zeros((1, hidden_pad), jnp.float32)
           .at[0, :hidden].set(b1).astype(compute_dtype))
    w2p = (jnp.zeros((hidden_pad, vocab_pad), jnp.float32)
           .at[:hidden, :vocab].set(w2).astype(jnp.bfloat16))
    b2p = jnp.full((1, vocab_pad), NEG_INF, jnp.float32).at[0, :vocab].set(b2)
    return w1p, b1p, w2p, b2p


def _vmem_plan(B, HP, VP):
    """Pick the batch tile TB and an explicit VMEM limit from actual buffers."""
    # Resident weights; assume the pipeliner double-buffers even constant
    # index-map specs (conservative).
    weight_bytes = 2 * (8 * HP * 4 + HP * 4 + HP * VP * 2 + VP * 4)
    # Per batch-row VMEM: double-buffered x + out blocks, plus f32 logits and
    # h temporaries (worst case f32 h).
    per_row = 2 * (4 * 4) + 2 * (VP * 4) + VP * 4 + HP * 4

    budget = VMEM_TARGET - weight_bytes
    assert budget >= 8 * per_row, (
        "vocab too large for the resident-w2 fast path; "
        "TODO(synk): stream VP with an 'arbitrary' grid axis + online LSE")

    cap = min(1024, max(8, (budget // per_row) // 8 * 8))
    TB = min(cap, _round_up(B, 8))
    # Keep >= 2 grid steps for mid/large batches so ("parallel",) actually
    # shards the batch axis across both v7x TensorCores.
    if B >= 16:
        TB = min(TB, _round_up(pl.cdiv(B, 2), 8))
    TB = max(TB, 8)

    need = weight_bytes + per_row * TB
    vmem_limit = max(32 << 20, min(int(need * 1.25) + (1 << 20), 60 << 20))
    return TB, vmem_limit


def sender2_forward(x, w1p, b1p, w2p, b2p, vocab_size, *, bf16_exp=False,
                    crop=True):
    """x: [B, 4] float32 (column 0 unused). Returns log-probs [B, vocab_size]."""
    assert x.shape[1] == 4, "Sender2 expects 4 input columns (drops column 0)"
    B = x.shape[0]
    HP = w1p.shape[1]
    VP = w2p.shape[1]

    TB, vmem_limit = _vmem_plan(B, HP, VP)
    B_pad = _round_up(B, TB)
    if B_pad != B:
        x = jnp.pad(x, ((0, B_pad - B), (0, 0)))
    grid = (B_pad // TB,)

    flops = 2 * B_pad * (3 * HP + HP * VP)
    bytes_accessed = (B_pad * 4 * 4                    # x
                      + 8 * HP * w1p.dtype.itemsize    # w1
                      + HP * b1p.dtype.itemsize        # b1
                      + HP * VP * 2                    # w2 (bf16)
                      + VP * 4                         # b2
                      + B_pad * VP * 4)                # out

    kernel = functools.partial(sender2_kernel, bf16_exp=bf16_exp)

    out = pl.pallas_call(
        kernel,
        out_shape=jax.ShapeDtypeStruct((B_pad, VP), jnp.float32),
        grid=grid,
        in_specs=[
            pl.BlockSpec((TB, 4), lambda i: (i, 0)),
            pl.BlockSpec((8, HP), lambda i: (0, 0)),   # weights stay resident
            pl.BlockSpec((1, HP), lambda i: (0, 0)),
            pl.BlockSpec((HP, VP), lambda i: (0, 0)),
            pl.BlockSpec((1, VP), lambda i: (0, 0)),
        ],
        out_specs=pl.BlockSpec((TB, VP), lambda i: (i, 0)),
        compiler_params=pltpu.CompilerParams(
            dimension_semantics=("parallel",),
            vmem_limit_bytes=vmem_limit),
        cost_estimate=pl.CostEstimate(
            flops=flops,
            transcendentals=B_pad * VP,
            bytes_accessed=bytes_accessed),
    )(x, w1p, b1p, w2p, b2p)

    if not crop:
        # Padded lanes hold ~-1e30 log-probs, padded batch rows are garbage;
        # the consumer must mask them itself (saves an extra HBM read+write).
        return out
    return out[:B, :vocab_size]


def init_sender2_params(key, vocab_size, hidden=HIDDEN):
    """PyTorch-style init U(-1/sqrt(fan_in), 1/sqrt(fan_in)); [in, out] layout."""
    k1, k2, k3, k4 = jax.random.split(key, 4)
    bound1 = 1.0 / jnp.sqrt(3.0)
    bound2 = 1.0 / jnp.sqrt(float(hidden))
    w1 = jax.random.uniform(k1, (3, hidden), jnp.float32, -bound1, bound1)
    b1 = jax.random.uniform(k2, (hidden,), jnp.float32, -bound1, bound1)
    w2 = jax.random.uniform(k3, (hidden, vocab_size), jnp.float32, -bound2, bound2)
    b2 = jax.random.uniform(k4, (vocab_size,), jnp.float32, -bound2, bound2)
    return w1, b1, w2, b2


def reference_forward(x, w1, b1, w2, b2):
    """Plain-JAX f32 reference matching the PyTorch module."""
    x3 = x[:, 1:]
    h = x3 @ w1 + b1
    h = jnp.where(h > 0, h, NEG_SLOPE * h)
    logits = h @ w2 + b2
    return jax.nn.log_softmax(logits, axis=-1)


if __name__ == "__main__":
    key = jax.random.PRNGKey(0)
    k_x, k_p, k_x2, k_p2 = jax.random.split(key, 4)

    use_bf16 = _use_bf16_vpu()
    compute_dtype = jnp.bfloat16 if use_bf16 else jnp.float32

    # --- primary small test: batch=8, vocab=16 (matches the module) ---------
    batch = 8
    vocab_size = 16
    x = jax.random.uniform(k_x, (batch, 4), jnp.float32)
    w1, b1, w2, b2 = init_sender2_params(k_p, vocab_size)
    w1p, b1p, w2p, b2p = prepare_params(w1, b1, w2, b2,
                                        compute_dtype=compute_dtype)

    out = sender2_forward(x, w1p, b1p, w2p, b2p, vocab_size)
    out = jax.block_until_ready(out)

    ref = reference_forward(x, w1, b1, w2, b2)
    row_sums = jnp.sum(jnp.exp(out), axis=-1)
    assert out.shape == (batch, vocab_size)
    assert bool(jnp.all(jnp.isfinite(out)))
    assert bool(jnp.allclose(row_sums, 1.0, atol=1e-5))
    # bf16 fc1/fc2 path -> loose tolerance vs. the f32 reference.
    assert bool(jnp.allclose(out, ref, atol=5e-2, rtol=5e-2))

    # --- secondary test: exercises batch padding and a multi-step grid -------
    batch2 = 48
    vocab2 = 200
    x2 = jax.random.uniform(k_x2, (batch2, 4), jnp.float32)
    w1b, b1b, w2b, b2b = init_sender2_params(k_p2, vocab2)
    p2 = prepare_params(w1b, b1b, w2b, b2b, compute_dtype=compute_dtype)

    out2 = jax.block_until_ready(
        sender2_forward(x2, *p2, vocab2))
    ref2 = reference_forward(x2, w1b, b1b, w2b, b2b)
    assert out2.shape == (batch2, vocab2)
    assert bool(jnp.all(jnp.isfinite(out2)))
    assert bool(jnp.allclose(jnp.sum(jnp.exp(out2), axis=-1), 1.0, atol=1e-5))
    assert bool(jnp.allclose(out2, ref2, atol=5e-2, rtol=5e-2))

    print("KERNEL_OK")
</pallas_src>

<mosaic_0001>
module attributes {stable_mosaic.version = 11 : i64} {
  func.func @sender2_kernel(%arg0: i32, %arg1: memref<8x4xf32, #tpu.memory_space<vmem>>, %arg2: memref<8x512xf32, #tpu.memory_space<vmem>>, %arg3: memref<1x512xf32, #tpu.memory_space<vmem>>, %arg4: memref<512x128xbf16, #tpu.memory_space<vmem>>, %arg5: memref<1x128xf32, #tpu.memory_space<vmem>>, %arg6: memref<8x128xf32, #tpu.memory_space<vmem>>) attributes {dimension_semantics = [#tpu.dimension_semantics<parallel>], iteration_bounds = array<i64: 1>, scalar_prefetch = 0 : i64, scratch_operands = 0 : i64, tpu.core_type = #tpu.core_type<tc>, window_params = [{transform_indices = @transform_0, window_bounds = array<i64: 8, 4>}, {pipeline_mode = #tpu.pipeline_mode<synchronous>, transform_indices = @transform_1, window_bounds = array<i64: 8, 512>}, {pipeline_mode = #tpu.pipeline_mode<synchronous>, transform_indices = @transform_2, window_bounds = array<i64: 1, 512>}, {pipeline_mode = #tpu.pipeline_mode<synchronous>, transform_indices = @transform_3, window_bounds = array<i64: 512, 128>}, {pipeline_mode = #tpu.pipeline_mode<synchronous>, transform_indices = @transform_4, window_bounds = array<i64: 1, 128>}, {transform_indices = @transform_5, window_bounds = array<i64: 8, 128>}]} {
    %c0 = arith.constant 0 : index
    %c0_0 = arith.constant 0 : index
    %0 = vector.load %arg1[%c0, %c0_0] : memref<8x4xf32, #tpu.memory_space<vmem>>, vector<8x4xf32>
    %1 = vector.extract_strided_slice %0 {offsets = [0, 1], sizes = [8, 1], strides = [1, 1]} : vector<8x4xf32> to vector<8x1xf32>
    %c0_1 = arith.constant 0 : index
    %c0_2 = arith.constant 0 : index
    %2 = vector.load %arg2[%c0_1, %c0_2] : memref<8x512xf32, #tpu.memory_space<vmem>>, vector<1x512xf32>
    %3 = vector.broadcast %1 : vector<8x1xf32> to vector<8x512xf32>
    %4 = vector.broadcast %2 : vector<1x512xf32> to vector<8x512xf32>
    %5 = arith.mulf %3, %4 : vector<8x512xf32>
    %6 = vector.extract_strided_slice %0 {offsets = [0, 2], sizes = [8, 1], strides = [1, 1]} : vector<8x4xf32> to vector<8x1xf32>
    %c1 = arith.constant 1 : index
    %c0_3 = arith.constant 0 : index
    %7 = vector.load %arg2[%c1, %c0_3] : memref<8x512xf32, #tpu.memory_space<vmem>>, vector<1x512xf32>
    %8 = vector.broadcast %6 : vector<8x1xf32> to vector<8x512xf32>
    %9 = vector.broadcast %7 : vector<1x512xf32> to vector<8x512xf32>
    %10 = arith.mulf %8, %9 : vector<8x512xf32>
    %11 = arith.addf %5, %10 : vector<8x512xf32>
    %12 = vector.extract_strided_slice %0 {offsets = [0, 3], sizes = [8, 1], strides = [1, 1]} : vector<8x4xf32> to vector<8x1xf32>
    %c2 = arith.constant 2 : index
    %c0_4 = arith.constant 0 : index
    %13 = vector.load %arg2[%c2, %c0_4] : memref<8x512xf32, #tpu.memory_space<vmem>>, vector<1x512xf32>
    %14 = vector.broadcast %12 : vector<8x1xf32> to vector<8x512xf32>
    %15 = vector.broadcast %13 : vector<1x512xf32> to vector<8x512xf32>
    %16 = arith.mulf %14, %15 : vector<8x512xf32>
    %17 = arith.addf %11, %16 : vector<8x512xf32>
    %c0_5 = arith.constant 0 : index
    %c0_6 = arith.constant 0 : index
    %18 = vector.load %arg3[%c0_5, %c0_6] : memref<1x512xf32, #tpu.memory_space<vmem>>, vector<1x512xf32>
    %19 = vector.broadcast %18 : vector<1x512xf32> to vector<8x512xf32>
    %20 = arith.addf %17, %19 : vector<8x512xf32>
    %cst = arith.constant 0.00999999977 : f32
    %21 = vector.broadcast %cst : f32 to vector<8x512xf32>
    %22 = arith.mulf %21, %20 : vector<8x512xf32>
    %23 = arith.maximumf %20, %22 : vector<8x512xf32>
    %24 = arith.truncf %23 : vector<8x512xf32> to vector<8x512xbf16>
    %c0_7 = arith.constant 0 : index
    %c0_8 = arith.constant 0 : index
    %25 = vector.load %arg4[%c0_7, %c0_8] : memref<512x128xbf16, #tpu.memory_space<vmem>>, vector<512x128xbf16>
    %cst_9 = arith.constant dense<0.000000e+00> : vector<8x128xf32>
    %26 = tpu.matmul %24, %25, %cst_9 {dimension_numbers = #tpu.dot_dimension_numbers<[1], [0], [0], [1], [0, 0, 1, 1], [], []>} : vector<8x512xbf16>, vector<512x128xbf16>, vector<8x128xf32> -> vector<8x128xf32>
    %c0_10 = arith.constant 0 : index
    %c0_11 = arith.constant 0 : index
    %27 = vector.load %arg5[%c0_10, %c0_11] : memref<1x128xf32, #tpu.memory_space<vmem>>, vector<1x128xf32>
    %28 = vector.broadcast %27 : vector<1x128xf32> to vector<8x128xf32>
    %29 = arith.addf %26, %28 : vector<8x128xf32>
    %cst_12 = arith.constant dense<0xFF800000> : vector<8xf32>
    %30 = vector.multi_reduction <maximumf>, %29, %cst_12 [1] : vector<8x128xf32> to vector<8xf32>
    %31 = vector.shape_cast %30 : vector<8xf32> to vector<8x1xf32>
    %32 = vector.broadcast %31 : vector<8x1xf32> to vector<8x128xf32>
    %33 = arith.subf %29, %32 : vector<8x128xf32>
    %34 = math.exp %33 : vector<8x128xf32>
    %cst_13 = arith.constant dense<0.000000e+00> : vector<8xf32>
    %35 = vector.multi_reduction <add>, %34, %cst_13 [1] : vector<8x128xf32> to vector<8xf32>
    %36 = vector.shape_cast %35 : vector<8xf32> to vector<8x1xf32>
    %37 = math.log %36 : vector<8x1xf32>
    %38 = vector.broadcast %37 : vector<8x1xf32> to vector<8x128xf32>
    %39 = arith.subf %33, %38 : vector<8x128xf32>
    %c0_14 = arith.constant 0 : index
    %c0_15 = arith.constant 0 : index
    %40 = vector.load %arg6[%c0_14, %c0_15] : memref<8x128xf32, #tpu.memory_space<vmem>>, vector<8x128xf32>
    tpu.vector_store %arg6[%c0_14, %c0_15], %39 {strides = array<i32>} : memref<8x128xf32, #tpu.memory_space<vmem>>, vector<8x128xf32>,
    return
  }
  func.func @transform_0(%arg0: i32) -> (i32, i32) {
    %c0_i32 = arith.constant 0 : i32
    %c0_i32_0 = arith.constant 0 : i32
    return %arg0, %c0_i32 : i32, i32
  }
  func.func @transform_1(%arg0: i32) -> (i32, i32) {
    %c0_i32 = arith.constant 0 : i32
    %c0_i32_0 = arith.constant 0 : i32
    %c0_i32_1 = arith.constant 0 : i32
    return %c0_i32, %c0_i32_0 : i32, i32
  }
  func.func @transform_2(%arg0: i32) -> (i32, i32) {
    %c0_i32 = arith.constant 0 : i32
    %c0_i32_0 = arith.constant 0 : i32
    %c0_i32_1 = arith.constant 0 : i32
    return %c0_i32, %c0_i32_0 : i32, i32
  }
  func.func @transform_3(%arg0: i32) -> (i32, i32) {
    %c0_i32 = arith.constant 0 : i32
    %c0_i32_0 = arith.constant 0 : i32
    %c0_i32_1 = arith.constant 0 : i32
    return %c0_i32, %c0_i32_0 : i32, i32
  }
  func.func @transform_4(%arg0: i32) -> (i32, i32) {
    %c0_i32 = arith.constant 0 : i32
    %c0_i32_0 = arith.constant 0 : i32
    %c0_i32_1 = arith.constant 0 : i32
    return %c0_i32, %c0_i32_0 : i32, i32
  }
  func.func @transform_5(%arg0: i32) -> (i32, i32) {
    %c0_i32 = arith.constant 0 : i32
    %c0_i32_0 = arith.constant 0 : i32
    return %arg0, %c0_i32 : i32, i32
  }
}

</mosaic_0001>

<llo_original>
// kernel: tpu_custom_call.1
$region0: #{tpu_custom_call.1}
  #allocation0 [shape = 'u32[]', space=smem, size = 0x4, offset = 0x4, fixed_abs, tag = 'smem constant byte address 0x4 - core index']
  #allocation1 [shape = 'u32[144,128]{1,0:T(1,128)}', space=vmem, size = 0x12000, scoped, tag = 'internal scratch']
  %s0 = inlined_call_operand.vmem [shape: f32[8,4], index: 0, kind: input, shape index: {}]
  %s1 = inlined_call_operand.hbm [shape: f32[8,512], index: 1, kind: input, shape index: {}]
  %s2 = inlined_call_operand.vmem [shape: f32[1,512], index: 2, kind: input, shape index: {}]
  %s3 = inlined_call_operand.hbm [shape: bf16[512,128], index: 3, kind: input, shape index: {}]
  %s4 = inlined_call_operand.vmem [shape: f32[1,128], index: 4, kind: input, shape index: {}]
  %s5 = inlined_call_operand.hbm [shape: f32[8,128], index: 5, kind: output, shape index: {}]
  %s6 = sld [smem:[#allocation0]]
  $region38: #{tpu_custom_call.1} parent=0
    _
  %s8 = ssub.s32 1, %s6
  %s9 = scalar_select 0, %s8, %s6
  $region1: #{tpu_custom_call.1} parent=0
    #allocation2 [shape = 'u8[16384]{0}', space=vmem, size = 0x4000, scoped, tag = 'input window, operand 1, single buffered']
    #allocation3 [shape = 's32[1]{0}', space=sflag, size = 0x4, scoped, tag = 'scoped memory for tpu_custom_call.1']
    #allocation4 [shape = 's32[1]{0}', space=sflag, size = 0x4, scoped, tag = 'scoped memory for tpu_custom_call.1']
    #allocation5 [shape = 'u8[131072]{0}', space=vmem, size = 0x20000, scoped, tag = 'input window, operand 3, single buffered']
    #allocation6 [shape = 's32[1]{0}', space=sflag, size = 0x4, scoped, tag = 'scoped memory for tpu_custom_call.1']
    #allocation7 [shape = 'u8[4096]{0}', space=vmem, size = 0x1000, scoped, tag = 'output window, operand 0, single buffered']
    %10 = vsyncpa [#allocation3], 0
    %11 = vsyncpa [#allocation6], 0
    %12 = vsyncpa [#allocation4], 0
    // Predicated region
    $region2: #{tpu_custom_call.1} parent=1 // pred_check
      _
    $region3: #{tpu_custom_call.1} parent=1 // pred_check_branch
      %14 = sbr.rel (0) target = $region5
    $region4: #{tpu_custom_call.1} parent=1 // pred_region
      _
    $region5: #{tpu_custom_call.1} parent=1 // pred_fallthru
      _
    // Predicated region
    $region6: #{tpu_custom_call.1} parent=1 // pred_check
      _
    $region7: #{tpu_custom_call.1} parent=1 // pred_check_branch
      %16 = sbr.rel (0) target = $region9
    $region8: #{tpu_custom_call.1} parent=1 // pred_region
      %s18 = ssub.s32 512, 512
      %19 = vsyncadd [#allocation3], %s18
      %s21 = sshll.u32 [#allocation2], 4
      %s22 = int_to_ptr.vmem [resolvable:$true] %s21
      %24 = dma.hbm_to_vmem [thread:$0]  %s1, 512, %s22, [#allocation3]
    $region9: #{tpu_custom_call.1} parent=1 // pred_fallthru
      _
    // Predicated region
    $region10: #{tpu_custom_call.1} parent=1 // pred_check
      _
    $region11: #{tpu_custom_call.1} parent=1 // pred_check_branch
      %26 = sbr.rel (0) target = $region13
    $region12: #{tpu_custom_call.1} parent=1 // pred_region
      _
    $region13: #{tpu_custom_call.1} parent=1 // pred_fallthru
      _
    // Predicated region
    $region14: #{tpu_custom_call.1} parent=1 // pred_check
      _
    $region15: #{tpu_custom_call.1} parent=1 // pred_check_branch
      %28 = sbr.rel (0) target = $region17
    $region16: #{tpu_custom_call.1} parent=1 // pred_region
      %s30 = ssub.s32 4096, 4096
      %31 = vsyncadd [#allocation6], %s30
      %s32 = sshll.u32 [#allocation5], 4
      %s33 = int_to_ptr.vmem [resolvable:$true] %s32
      %38 = dma.hbm_to_vmem [thread:$0]  %s3, 4096, %s33, [#allocation6], 64, 64, 4
    $region17: #{tpu_custom_call.1} parent=1 // pred_fallthru
      _
    // Predicated region
    $region18: #{tpu_custom_call.1} parent=1 // pred_check
      _
    $region19: #{tpu_custom_call.1} parent=1 // pred_check_branch
      %40 = sbr.rel (0) target = $region21
    $region20: #{tpu_custom_call.1} parent=1 // pred_region
      _
    $region21: #{tpu_custom_call.1} parent=1 // pred_fallthru
      _
    // Predicated region
    $region22: #{tpu_custom_call.1} parent=1 // pred_check
      _
    $region23: #{tpu_custom_call.1} parent=1 // pred_check_branch
      %42 = sbr.rel (0) target = $region25
    $region24: #{tpu_custom_call.1} parent=1 // pred_region
      %43 = dma.done [#allocation3], 512
    $region25: #{tpu_custom_call.1} parent=1 // pred_fallthru
      _
    // Predicated region
    $region26: #{tpu_custom_call.1} parent=1 // pred_check
      _
    $region27: #{tpu_custom_call.1} parent=1 // pred_check_branch
      %45 = sbr.rel (0) target = $region29
    $region28: #{tpu_custom_call.1} parent=1 // pred_region
      %46 = dma.done [#allocation6], 4096
    $region29: #{tpu_custom_call.1} parent=1 // pred_fallthru
      _
    %v48 = vld [vmem:[%s0] sm:$0xff]
    %v49 = vld [vmem:[#allocation2] ss:$8 sm:$0xf]
    %51 = vset.pattern.permute.xlu0 1
    %52 = vperm.xlu0 %51, %v48
    %v53 = vpop.permute.xlu0 %52
    %v56 = vlaneseq
    %v57 = vshrl.u32 %v56, 7
    %v58 = vsub.s32 0, %v57
    %v59 = vrot.slane %v49, %v58
    %v60 = vlaneseq
    %v61 = vshrl.u32 %v60, 7
    %v62 = vsub.s32 1, %v61
    %v63 = vrot.slane %v49, %v62
    %v64 = vlaneseq
    %v65 = vshrl.u32 %v64, 7
    %v66 = vsub.s32 2, %v65
    %v67 = vrot.slane %v49, %v66
    %v68 = vlaneseq
    %v69 = vshrl.u32 %v68, 7
    %v70 = vsub.s32 3, %v69
    %v71 = vrot.slane %v49, %v70
    %v76 = vmul.f32 %v53, %v59
    %v77 = vmul.f32 %v53, %v63
    %v78 = vmul.f32 %v53, %v67
    %v79 = vmul.f32 %v53, %v71
    %s80 = scalar_lea.vmem [#allocation2], 1
    %v81 = vld [vmem:[%s80] ss:$8 sm:$0xf]
    %82 = vset.pattern.permute.xlu0 2
    %83 = vperm.xlu0 %82, %v48
    %v84 = vpop.permute.xlu0 %83
    %v87 = vlaneseq
    %v88 = vshrl.u32 %v87, 7
    %v89 = vsub.s32 0, %v88
    %v90 = vrot.slane %v81, %v89
    %v91 = vlaneseq
    %v92 = vshrl.u32 %v91, 7
    %v93 = vsub.s32 1, %v92
    %v94 = vrot.slane %v81, %v93
    %v95 = vlaneseq
    %v96 = vshrl.u32 %v95, 7
    %v97 = vsub.s32 2, %v96
    %v98 = vrot.slane %v81, %v97
    %v99 = vlaneseq
    %v100 = vshrl.u32 %v99, 7
    %v101 = vsub.s32 3, %v100
    %v102 = vrot.slane %v81, %v101
    %v107 = vmul.f32 %v84, %v90
    %v108 = vmul.f32 %v84, %v94
    %v109 = vmul.f32 %v84, %v98
    %v110 = vmul.f32 %v84, %v102
    %v111 = vadd.f32 %v76, %v107
    %v112 = vadd.f32 %v77, %v108
    %v113 = vadd.f32 %v78, %v109
    %v114 = vadd.f32 %v79, %v110
    %s115 = scalar_lea.vmem [#allocation2], 2
    %v116 = vld [vmem:[%s115] ss:$8 sm:$0xf]
    %117 = vset.pattern.permute.xlu0 3
    %118 = vperm.xlu0 %117, %v48
    %v119 = vpop.permute.xlu0 %118
    %v122 = vlaneseq
    %v123 = vshrl.u32 %v122, 7
    %v124 = vsub.s32 0, %v123
    %v125 = vrot.slane %v116, %v124
    %v126 = vlaneseq
    %v127 = vshrl.u32 %v126, 7
    %v128 = vsub.s32 1, %v127
    %v129 = vrot.slane %v116, %v128
    %v130 = vlaneseq
    %v131 = vshrl.u32 %v130, 7
    %v132 = vsub.s32 2, %v131
    %v133 = vrot.slane %v116, %v132
    %v134 = vlaneseq
    %v135 = vshrl.u32 %v134, 7
    %v136 = vsub.s32 3, %v135
    %v137 = vrot.slane %v116, %v136
    %v142 = vmul.f32 %v119, %v125
    %v143 = vmul.f32 %v119, %v129
    %v144 = vmul.f32 %v119, %v133
    %v145 = vmul.f32 %v119, %v137
    %v146 = vadd.f32 %v111, %v142
    %v147 = vadd.f32 %v112, %v143
    %v148 = vadd.f32 %v113, %v144
    %v149 = vadd.f32 %v114, %v145
    %v150 = vld [vmem:[%s2] sm:$0xf]
    %v152 = vlaneseq
    %v153 = vshrl.u32 %v152, 7
    %v154 = vsub.s32 0, %v153
    %v155 = vrot.slane %v150, %v154
    %v156 = vlaneseq
    %v157 = vshrl.u32 %v156, 7
    %v158 = vsub.s32 1, %v157
    %v159 = vrot.slane %v150, %v158
    %v160 = vlaneseq
    %v161 = vshrl.u32 %v160, 7
    %v162 = vsub.s32 2, %v161
    %v163 = vrot.slane %v150, %v162
    %v164 = vlaneseq
    %v165 = vshrl.u32 %v164, 7
    %v166 = vsub.s32 3, %v165
    %v167 = vrot.slane %v150, %v166
    %v172 = vadd.f32 %v146, %v155
    %v173 = vadd.f32 %v147, %v159
    %v174 = vadd.f32 %v148, %v163
    %v175 = vadd.f32 %v149, %v167
    %v176 = vmul.f32 %v172, 0.01
    %v177 = vmul.f32 %v173, 0.01
    %v178 = vmul.f32 %v174, 0.01
    %v179 = vmul.f32 %v175, 0.01
    %v180 = vmax.f32 %v172, %v176
    %v181 = vmax.f32 %v173, %v177
    %v182 = vmax.f32 %v174, %v178
    %v183 = vmax.f32 %v175, %v179
    %v184 = vpack.c.bf16 %v180, %v180
    %v185 = vpack.c.bf16 %v181, %v181
    %v186 = vpack.c.bf16 %v182, %v182
    %v187 = vpack.c.bf16 %v183, %v183
    %v188 = vld [vmem:[#allocation5] sm:$0xf]
    %v189 = vld [vmem:[#allocation5 + $0x4] sm:$0xf]
    %v190 = vld [vmem:[#allocation5 + $0x8] sm:$0xf]
    %v191 = vld [vmem:[#allocation5 + $0xc] sm:$0xf]
    %v192 = vld [vmem:[#allocation5 + $0x10] sm:$0xf]
    %v193 = vld [vmem:[#allocation5 + $0x14] sm:$0xf]
    %v194 = vld [vmem:[#allocation5 + $0x18] sm:$0xf]
    %v195 = vld [vmem:[#allocation5 + $0x1c] sm:$0xf]
    %v196 = vld [vmem:[#allocation5 + $0x20] sm:$0xf]
    %v197 = vld [vmem:[#allocation5 + $0x24] sm:$0xf]
    %v198 = vld [vmem:[#allocation5 + $0x28] sm:$0xf]
    %v199 = vld [vmem:[#allocation5 + $0x2c] sm:$0xf]
    %v200 = vld [vmem:[#allocation5 + $0x30] sm:$0xf]
    %v201 = vld [vmem:[#allocation5 + $0x34] sm:$0xf]
    %v202 = vld [vmem:[#allocation5 + $0x38] sm:$0xf]
    %v203 = vld [vmem:[#allocation5 + $0x3c] sm:$0xf]
    %v204 = vld [vmem:[#allocation5 + $0x40] sm:$0xf]
    %v205 = vld [vmem:[#allocation5 + $0x44] sm:$0xf]
    %v206 = vld [vmem:[#allocation5 + $0x48] sm:$0xf]
    %v207 = vld [vmem:[#allocation5 + $0x4c] sm:$0xf]
    %v208 = vld [vmem:[#allocation5 + $0x50] sm:$0xf]
    %v209 = vld [vmem:[#allocation5 + $0x54] sm:$0xf]
    %v210 = vld [vmem:[#allocation5 + $0x58] sm:$0xf]
    %v211 = vld [vmem:[#allocation5 + $0x5c] sm:$0xf]
    %v212 = vld [vmem:[#allocation5 + $0x60] sm:$0xf]
    %v213 = vld [vmem:[#allocation5 + $0x64] sm:$0xf]
    %v214 = vld [vmem:[#allocation5 + $0x68] sm:$0xf]
    %v215 = vld [vmem:[#allocation5 + $0x6c] sm:$0xf]
    %v216 = vld [vmem:[#allocation5 + $0x70] sm:$0xf]
    %v217 = vld [vmem:[#allocation5 + $0x74] sm:$0xf]
    %v218 = vld [vmem:[#allocation5 + $0x78] sm:$0xf]
    %v219 = vld [vmem:[#allocation5 + $0x7c] sm:$0xf]
    %v220 = vld [vmem:[#allocation5 + $0x80] sm:$0xf]
    %v221 = vld [vmem:[#allocation5 + $0x84] sm:$0xf]
    %v222 = vld [vmem:[#allocation5 + $0x88] sm:$0xf]
    %v223 = vld [vmem:[#allocation5 + $0x8c] sm:$0xf]
    %v224 = vld [vmem:[#allocation5 + $0x90] sm:$0xf]
    %v225 = vld [vmem:[#allocation5 + $0x94] sm:$0xf]
    %v226 = vld [vmem:[#allocation5 + $0x98] sm:$0xf]
    %v227 = vld [vmem:[#allocation5 + $0x9c] sm:$0xf]
    %v228 = vld [vmem:[#allocation5 + $0xa0] sm:$0xf]
    %v229 = vld [vmem:[#allocation5 + $0xa4] sm:$0xf]
    %v230 = vld [vmem:[#allocation5 + $0xa8] sm:$0xf]
    %v231 = vld [vmem:[#allocation5 + $0xac] sm:$0xf]
    %v232 = vld [vmem:[#allocation5 + $0xb0] sm:$0xf]
    %v233 = vld [vmem:[#allocation5 + $0xb4] sm:$0xf]
    %v234 = vld [vmem:[#allocation5 + $0xb8] sm:$0xf]
    %v235 = vld [vmem:[#allocation5 + $0xbc] sm:$0xf]
    %v236 = vld [vmem:[#allocation5 + $0xc0] sm:$0xf]
    %v237 = vld [vmem:[#allocation5 + $0xc4] sm:$0xf]
    %v238 = vld [vmem:[#allocation5 + $0xc8] sm:$0xf]
    %v239 = vld [vmem:[#allocation5 + $0xcc] sm:$0xf]
    %v240 = vld [vmem:[#allocation5 + $0xd0] sm:$0xf]
    %v241 = vld [vmem:[#allocation5 + $0xd4] sm:$0xf]
    %v242 = vld [vmem:[#allocation5 + $0xd8] sm:$0xf]
    %v243 = vld [vmem:[#allocation5 + $0xdc] sm:$0xf]
    %v244 = vld [vmem:[#allocation5 + $0xe0] sm:$0xf]
    %v245 = vld [vmem:[#allocation5 + $0xe4] sm:$0xf]
    %v246 = vld [vmem:[#allocation5 + $0xe8] sm:$0xf]
    %v247 = vld [vmem:[#allocation5 + $0xec] sm:$0xf]
    %v248 = vld [vmem:[#allocation5 + $0xf0] sm:$0xf]
    %v249 = vld [vmem:[#allocation5 + $0xf4] sm:$0xf]
    %v250 = vld [vmem:[#allocation5 + $0xf8] sm:$0xf]
    %v251 = vld [vmem:[#allocation5 + $0xfc] sm:$0xf]
    %v252 = vld [vmem:[%s4] sm:$0x1]
    %v254 = vlaneseq
    %v255 = vshrl.u32 %v254, 7
    %v256 = vsub.s32 0, %v255
    %v257 = vrot.slane %v252, %v256
    %v323 = vunpack.c.l.b16 %v188
    %v324 = vunpack.c.l.b16 %v189
    %v325 = vunpack.c.l.b16 %v190
    %v326 = vunpack.c.l.b16 %v191
    %v327 = vunpack.c.l.b16 %v192
    %v328 = vunpack.c.l.b16 %v193
    %v329 = vunpack.c.l.b16 %v194
    %v330 = vunpack.c.l.b16 %v195
    %v331 = vunpack.c.l.b16 %v196
    %v332 = vunpack.c.l.b16 %v197
    %v333 = vunpack.c.l.b16 %v198
    %v334 = vunpack.c.l.b16 %v199
    %v335 = vunpack.c.l.b16 %v200
    %v336 = vunpack.c.l.b16 %v201
    %v337 = vunpack.c.l.b16 %v202
    %v338 = vunpack.c.l.b16 %v203
    %v339 = vunpack.c.l.b16 %v204
    %v340 = vunpack.c.l.b16 %v205
    %v341 = vunpack.c.l.b16 %v206
    %v342 = vunpack.c.l.b16 %v207
    %v343 = vunpack.c.l.b16 %v208
    %v344 = vunpack.c.l.b16 %v209
    %v345 = vunpack.c.l.b16 %v210
    %v346 = vunpack.c.l.b16 %v211
    %v347 = vunpack.c.l.b16 %v212
    %v348 = vunpack.c.l.b16 %v213
    %v349 = vunpack.c.l.b16 %v214
    %v350 = vunpack.c.l.b16 %v215
    %v351 = vunpack.c.l.b16 %v216
    %v352 = vunpack.c.l.b16 %v217
    %v353 = vunpack.c.l.b16 %v218
    %v354 = vunpack.c.l.b16 %v219
    %v355 = vunpack.c.l.b16 %v220
    %v356 = vunpack.c.l.b16 %v221
    %v357 = vunpack.c.l.b16 %v222
    %v358 = vunpack.c.l.b16 %v223
    %v359 = vunpack.c.l.b16 %v224
    %v360 = vunpack.c.l.b16 %v225
    %v361 = vunpack.c.l.b16 %v226
    %v362 = vunpack.c.l.b16 %v227
    %v363 = vunpack.c.l.b16 %v228
    %v364 = vunpack.c.l.b16 %v229
    %v365 = vunpack.c.l.b16 %v230
    %v366 = vunpack.c.l.b16 %v231
    %v367 = vunpack.c.l.b16 %v232
    %v368 = vunpack.c.l.b16 %v233
    %v369 = vunpack.c.l.b16 %v234
    %v370 = vunpack.c.l.b16 %v235
    %v371 = vunpack.c.l.b16 %v236
    %v372 = vunpack.c.l.b16 %v237
    %v373 = vunpack.c.l.b16 %v238
    %v374 = vunpack.c.l.b16 %v239
    %v375 = vunpack.c.l.b16 %v240
    %v376 = vunpack.c.l.b16 %v241
    %v377 = vunpack.c.l.b16 %v242
    %v378 = vunpack.c.l.b16 %v243
    %v379 = vunpack.c.l.b16 %v244
    %v380 = vunpack.c.l.b16 %v245
    %v381 = vunpack.c.l.b16 %v246
    %v382 = vunpack.c.l.b16 %v247
    %v383 = vunpack.c.l.b16 %v248
    %v384 = vunpack.c.l.b16 %v249
    %v385 = vunpack.c.l.b16 %v250
    %v386 = vunpack.c.l.b16 %v251
    %v387 = vpack.c.b16 %v324, %v323
    %v388 = vpack.c.b16 %v326, %v325
    %v389 = vpack.c.b16 %v328, %v327
    %v390 = vpack.c.b16 %v330, %v329
    %v391 = vpack.c.b16 %v332, %v331
    %v392 = vpack.c.b16 %v334, %v333
    %v393 = vpack.c.b16 %v336, %v335
    %v394 = vpack.c.b16 %v338, %v337
    %v395 = vpack.c.b16 %v340, %v339
    %v396 = vpack.c.b16 %v342, %v341
    %v397 = vpack.c.b16 %v344, %v343
    %v398 = vpack.c.b16 %v346, %v345
    %v399 = vpack.c.b16 %v348, %v347
    %v400 = vpack.c.b16 %v350, %v349
    %v401 = vpack.c.b16 %v352, %v351
    %v402 = vpack.c.b16 %v354, %v353
    %v403 = vpack.c.b16 %v356, %v355
    %v404 = vpack.c.b16 %v358, %v357
    %v405 = vpack.c.b16 %v360, %v359
    %v406 = vpack.c.b16 %v362, %v361
    %v407 = vpack.c.b16 %v364, %v363
    %v408 = vpack.c.b16 %v366, %v365
    %v409 = vpack.c.b16 %v368, %v367
    %v410 = vpack.c.b16 %v370, %v369
    %v411 = vpack.c.b16 %v372, %v371
    %v412 = vpack.c.b16 %v374, %v373
    %v413 = vpack.c.b16 %v376, %v375
    %v414 = vpack.c.b16 %v378, %v377
    %v415 = vpack.c.b16 %v380, %v379
    %v416 = vpack.c.b16 %v382, %v381
    %v417 = vpack.c.b16 %v384, %v383
    %v418 = vpack.c.b16 %v386, %v385
    %451 = vmatprep.subr.bf16.mxu0 0
    %452 = vmatpush1.bf16.msra.mxu0 %v387
    %453 = vmatprep.subr.bf16.mxu0 0
    %454 = vmatpush1.bf16.msra.mxu0 %v388
    %455 = vmatprep.subr.bf16.mxu0 0
    %456 = vmatpush1.bf16.msra.mxu0 %v389
    %457 = vmatprep.subr.bf16.mxu0 0
    %458 = vmatpush1.bf16.msra.mxu0 %v390
    %459 = vmatprep.subr.bf16.mxu0 0
    %460 = vmatpush1.bf16.msra.mxu0 %v391
    %461 = vmatprep.subr.bf16.mxu0 0
    %462 = vmatpush1.bf16.msra.mxu0 %v392
    %463 = vmatprep.subr.bf16.mxu0 0
    %464 = vmatpush1.bf16.msra.mxu0 %v393
    %465 = vmatprep.subr.bf16.mxu0 0
    %466 = vmatpush1.bf16.msra.mxu0 %v394
    %467 = vmatprep.subr.bf16.mxu0 0
    %468 = vmatpush1.bf16.msra.mxu0 %v395
    %469 = vmatprep.subr.bf16.mxu0 0
    %470 = vmatpush1.bf16.msra.mxu0 %v396
    %471 = vmatprep.subr.bf16.mxu0 0
    %472 = vmatpush1.bf16.msra.mxu0 %v397
    %473 = vmatprep.subr.bf16.mxu0 0
    %474 = vmatpush1.bf16.msra.mxu0 %v398
    %475 = vmatprep.subr.bf16.mxu0 0
    %476 = vmatpush1.bf16.msra.mxu0 %v399
    %477 = vmatprep.subr.bf16.mxu0 0
    %478 = vmatpush1.bf16.msra.mxu0 %v400
    %479 = vmatprep.subr.bf16.mxu0 0
    %480 = vmatpush1.bf16.msra.mxu0 %v401
    %481 = vmatprep.subr.bf16.mxu0 0
    %482 = vmatpush1.bf16.msra.mxu0 %v402
    %483 = vmatprep.mubr.bf16.mxu0 %v185
    %484 = vmatmul.mubr.bf16.gmra.mrb[0].mxu0 %v184
    %v485 = vpop.f32.mrb[0].mxu0
    %v486 = vadd.f32 %v257, %v485
    %v487 = vpop.f32.mrb[0].mxu0
    %v488 = vpop.f32.mrb[0].mxu0
    %v489 = vpop.f32.mrb[0].mxu0
    %490 = vdwg.mxu0
    %491 = vmatprep.subr.bf16.mxu0 0
    %492 = vmatpush1.bf16.msra.mxu0 %v403
    %493 = vmatprep.subr.bf16.mxu0 0
    %494 = vmatpush1.bf16.msra.mxu0 %v404
    %495 = vmatprep.subr.bf16.mxu0 0
    %496 = vmatpush1.bf16.msra.mxu0 %v405
    %497 = vmatprep.subr.bf16.mxu0 0
    %498 = vmatpush1.bf16.msra.mxu0 %v406
    %499 = vmatprep.subr.bf16.mxu0 0
    %500 = vmatpush1.bf16.msra.mxu0 %v407
    %501 = vmatprep.subr.bf16.mxu0 0
    %502 = vmatpush1.bf16.msra.mxu0 %v408
    %503 = vmatprep.subr.bf16.mxu0 0
    %504 = vmatpush1.bf16.msra.mxu0 %v409
    %505 = vmatprep.subr.bf16.mxu0 0
    %506 = vmatpush1.bf16.msra.mxu0 %v410
    %507 = vmatprep.subr.bf16.mxu0 0
    %508 = vmatpush1.bf16.msra.mxu0 %v411
    %509 = vmatprep.subr.bf16.mxu0 0
    %510 = vmatpush1.bf16.msra.mxu0 %v412
    %511 = vmatprep.subr.bf16.mxu0 0
    %512 = vmatpush1.bf16.msra.mxu0 %v413
    %513 = vmatprep.subr.bf16.mxu0 0
    %514 = vmatpush1.bf16.msra.mxu0 %v414
    %515 = vmatprep.subr.bf16.mxu0 0
    %516 = vmatpush1.bf16.msra.mxu0 %v415
    %517 = vmatprep.subr.bf16.mxu0 0
    %518 = vmatpush1.bf16.msra.mxu0 %v416
    %519 = vmatprep.subr.bf16.mxu0 0
    %520 = vmatpush1.bf16.msra.mxu0 %v417
    %521 = vmatprep.subr.bf16.mxu0 0
    %522 = vmatpush1.bf16.msra.mxu0 %v418
    %523 = vmatprep.mubr.bf16.mxu0 %v187
    %524 = vmatmul.mubr.bf16.gmra.mrb[0].mxu0 %v186
    %v525 = vpop.f32.mrb[0].mxu0
    %v526 = vadd.f32 %v486, %v525
    %v527 = vpop.f32.mrb[0].mxu0
    %v528 = vpop.f32.mrb[0].mxu0
    %v529 = vpop.f32.mrb[0].mxu0
    %530 = vdwg.mxu0
    %531 = vmax.xlane.f32.xlu0 %v526
    %v532 = vpop.xlane.xlu0 %531
    %v533 = vsub.f32 %v526, %v532
    %v534 = vmul.f32 %v533, 1.442695
    %v535 = vpow.pop %v534
    %536 = vadd.xlane.f32.xlu0 %v535
    %v537 = vpop.xlane.xlu0 %536
    %v538 = vlog2.pop %v537
    %v539 = vmul.f32 %v538, 0.6931472
    %v540 = vsub.f32 %v533, %v539
    %541 = vst [vmem:[#allocation7] sm:$0xff] %v540
    // Predicated region
    $region30: #{tpu_custom_call.1} parent=1 // pred_check
      _
    $region31: #{tpu_custom_call.1} parent=1 // pred_check_branch
      %543 = sbr.rel (0) target = $region33
    $region32: #{tpu_custom_call.1} parent=1 // pred_region
      %s545 = ssub.s32 128, 128
      %546 = vsyncadd [#allocation4], %s545
      %s548 = sshll.u32 [#allocation7], 4
      %s549 = int_to_ptr.vmem [resolvable:$true] %s548
      %551 = dma.vmem_to_hbm [thread:$0]  %s549, 128, %s5, [#allocation4]
    $region33: #{tpu_custom_call.1} parent=1 // pred_fallthru
      _
    // Predicated region
    $region34: #{tpu_custom_call.1} parent=1 // pred_check
      _
    $region35: #{tpu_custom_call.1} parent=1 // pred_check_branch
      %553 = sbr.rel (0) target = $region37
    $region36: #{tpu_custom_call.1} parent=1 // pred_region
      %554 = dma.done [#allocation4], 128
    $region37: #{tpu_custom_call.1} parent=1 // pred_fallthru
      _
    %555 = vsyncpa [#allocation3], 1
    %556 = vsyncpa [#allocation6], 1
    %557 = vsyncpa [#allocation4], 1

</llo_original>
